<compile_context>
chip_gen: v7x
topology: tpu7x:2x2x1
jax: 0.10.0
libtpu: 0.0.40
codegen_flags: <defaults>
</compile_context>

<pallas_src>
import jax
import jax.numpy as jnp
from jax.experimental import pallas as pl
from jax.experimental.pallas import tpu as pltpu


def _sigmoid_kernel(x_ref, o_ref):
    x = x_ref[...]
    if x.dtype == jnp.bfloat16:
        # bf16-native path (v6e/v7x VPU+EUP support bf16); tiles stay bf16.
        o_ref[...] = (1.0 / (1.0 + jnp.exp(-x))).astype(o_ref.dtype)
    else:
        xf = x.astype(jnp.float32)
        # exp on EUP, approximate reciprocal also on EUP -> VALU stays free.
        y = pl.reciprocal(1.0 + jnp.exp(-xf), approx=True)
        o_ref[...] = y.astype(o_ref.dtype)


@jax.jit
def sigmoid_pallas(x):
    """Elementwise sigmoid of an NCHW tensor via a Pallas TPU kernel."""
    orig_shape = x.shape
    dtype = x.dtype
    total = x.size

    LANES = 128
    itemsize = jnp.dtype(dtype).itemsize
    # Sublane granularity: 8 rows for 32-bit, 16 for bf16/f16, 32 for 8-bit.
    SUBL = max(8, 32 // max(itemsize, 1))

    if total % LANES == 0:
        # Free reshape of a contiguous array -> no extra HBM pass.
        rows = total // LANES
        x2d = x.reshape(rows, LANES)
        padded = False
    else:
        # Ragged-total fallback (not hit by the test shape): pad only the tail.
        rows = pl.cdiv(total, LANES)
        x2d = jnp.pad(x.reshape(-1), (0, rows * LANES - total)).reshape(rows, LANES)
        padded = True

    # ~2 MiB per block; in+out double-buffered => ~8 MiB live VMEM.
    TARGET_BLOCK_BYTES = 2 * 1024 * 1024
    target_rows = max(SUBL, TARGET_BLOCK_BYTES // (LANES * itemsize))
    target_rows = (target_rows // SUBL) * SUBL

    if rows <= target_rows:
        # Single block covering the full row extent (legal: equals full dim).
        tile_rows = rows
    else:
        # Multiple of the sublane tile; cdiv grid lets Pallas mask the
        # (possibly partial) last block instead of padding.
        tile_rows = target_rows

    grid = (pl.cdiv(rows, tile_rows),)

    out2d = pl.pallas_call(
        _sigmoid_kernel,
        out_shape=jax.ShapeDtypeStruct((rows, LANES), dtype),
        grid_spec=pltpu.PrefetchScalarGridSpec(
            num_scalar_prefetch=0,
            grid=grid,
            in_specs=[pl.BlockSpec((tile_rows, LANES), lambda i: (i, 0))],
            out_specs=pl.BlockSpec((tile_rows, LANES), lambda i: (i, 0)),
        ),
        compiler_params=pltpu.CompilerParams(
            dimension_semantics=("parallel",),
        ),
    )(x2d)

    if padded:
        return out2d.reshape(-1)[:total].reshape(orig_shape)
    return out2d.reshape(orig_shape)


if __name__ == "__main__":
    key = jax.random.PRNGKey(0)
    # NCHW input, small shape consistent with an activation test.
    x = jax.random.normal(key, (2, 4, 16, 16), dtype=jnp.float32)

    out = sigmoid_pallas(x)
    out = jax.block_until_ready(out)

    # Verify against plain-JAX reference.  Tolerance is relaxed slightly
    # because the kernel uses the EUP approximate reciprocal (vrcp).
    ref = jax.nn.sigmoid(x)
    assert out.shape == x.shape and out.dtype == x.dtype
    assert jnp.allclose(out, ref, atol=5e-3, rtol=5e-3)

    print("KERNEL_OK")
</pallas_src>

<mosaic_0001>
module attributes {stable_mosaic.version = 11 : i64} {
  func.func @_sigmoid_kernel(%arg0: i32, %arg1: memref<16x128xf32, #tpu.memory_space<vmem>>, %arg2: memref<16x128xf32, #tpu.memory_space<vmem>>) attributes {dimension_semantics = [#tpu.dimension_semantics<parallel>], iteration_bounds = array<i64: 1>, scalar_prefetch = 0 : i64, scratch_operands = 0 : i64, tpu.core_type = #tpu.core_type<tc>, window_params = [{transform_indices = @transform_0, window_bounds = array<i64: 16, 128>}, {transform_indices = @transform_1, window_bounds = array<i64: 16, 128>}]} {
    %c0 = arith.constant 0 : index
    %c0_0 = arith.constant 0 : index
    %0 = vector.load %arg1[%c0, %c0_0] : memref<16x128xf32, #tpu.memory_space<vmem>>, vector<16x128xf32>
    %cst = arith.constant 0.000000e+00 : f32
    %1 = vector.broadcast %cst : f32 to vector<16x128xf32>
    %2 = arith.subf %1, %0 : vector<16x128xf32>
    %3 = math.exp %2 : vector<16x128xf32>
    %cst_1 = arith.constant 1.000000e+00 : f32
    %4 = vector.broadcast %cst_1 : f32 to vector<16x128xf32>
    %5 = arith.addf %4, %3 : vector<16x128xf32>
    %6 = tpu.reciprocal %5 {approx = true} : vector<16x128xf32> -> vector<16x128xf32>
    %c0_2 = arith.constant 0 : index
    %c0_3 = arith.constant 0 : index
    %7 = vector.load %arg2[%c0_2, %c0_3] : memref<16x128xf32, #tpu.memory_space<vmem>>, vector<16x128xf32>
    tpu.vector_store %arg2[%c0_2, %c0_3], %6 {strides = array<i32>} : memref<16x128xf32, #tpu.memory_space<vmem>>, vector<16x128xf32>,
    return
  }
  func.func @transform_0(%arg0: i32) -> (i32, i32) {
    %c0_i32 = arith.constant 0 : i32
    %c0_i32_0 = arith.constant 0 : i32
    return %arg0, %c0_i32 : i32, i32
  }
  func.func @transform_1(%arg0: i32) -> (i32, i32) {
    %c0_i32 = arith.constant 0 : i32
    %c0_i32_0 = arith.constant 0 : i32
    return %arg0, %c0_i32 : i32, i32
  }
}

</mosaic_0001>

<llo_original>
// kernel: sigmoid_pallas.1
$region0: #{sigmoid_pallas.1}
  #allocation0 [shape = 'u32[]', space=smem, size = 0x4, offset = 0x4, fixed_abs, tag = 'smem constant byte address 0x4 - core index']
  #allocation1 [shape = 'u32[144,128]{1,0:T(1,128)}', space=vmem, size = 0x12000, scoped, tag = 'internal scratch']
  %s0 = inlined_call_operand.vmem [shape: f32[16,128], index: 0, kind: input, shape index: {}]
  %s1 = inlined_call_operand.vmem [shape: f32[16,128], index: 1, kind: output, shape index: {}]
  %s2 = sld [smem:[#allocation0]]
  $region14: #{sigmoid_pallas.1} parent=0
    _
  %s4 = ssub.s32 1, %s2
  %s5 = scalar_select 0, %s4, %s2
  // Predicated region
  $region2: #{sigmoid_pallas.1} parent=0 // pred_check
    _
  $region3: #{sigmoid_pallas.1} parent=0 // pred_check_branch
    %7 = sbr.rel (0) target = $region5
  $region4: #{sigmoid_pallas.1} parent=0 // pred_region
    _
  $region5: #{sigmoid_pallas.1} parent=0 // pred_fallthru
    _
  %v8 = vld [vmem:[%s0] sm:$0xff]
  %v9 = vld [vmem:[%s0 + $0x8] sm:$0xff]
  %v10 = vsub.f32 0.0, %v8
  %v11 = vsub.f32 0.0, %v9
  %v12 = vmul.f32 %v10, 1.442695
  %v13 = vpow.pop %v12
  %v14 = vmul.f32 %v11, 1.442695
  %v15 = vpow.pop %v14
  %v16 = vadd.f32 %v13, 1.0
  %v17 = vadd.f32 %v15, 1.0
  %v18 = vrcp.pop %v16
  %v19 = vrcp.pop %v17
  %20 = vst [vmem:[%s1] sm:$0xff] %v18
  %21 = vst [vmem:[%s1 + $0x8] sm:$0xff] %v19
  // Predicated region
  $region6: #{sigmoid_pallas.1} parent=0 // pred_check
    _
  $region7: #{sigmoid_pallas.1} parent=0 // pred_check_branch
    %23 = sbr.rel (0) target = $region9
  $region8: #{sigmoid_pallas.1} parent=0 // pred_region
    _
  $region9: #{sigmoid_pallas.1} parent=0 // pred_fallthru
    _
  // Predicated region
  $region10: #{sigmoid_pallas.1} parent=0 // pred_check
    _
  $region11: #{sigmoid_pallas.1} parent=0 // pred_check_branch
    %25 = sbr.rel (0) target = $region13
  $region12: #{sigmoid_pallas.1} parent=0 // pred_region
    _
  $region13: #{sigmoid_pallas.1} parent=0 // pred_fallthru
    _

</llo_original>
